<compile_context>
chip_gen: v5e
topology: v5e:2x2
jax: 0.10.0
libtpu: 0.0.40
codegen_flags: <defaults>
</compile_context>

<pallas_src>
import jax
import jax.numpy as jnp
from jax.experimental import pallas as pl
from jax.experimental.pallas import tpu as pltpu


def _round_up(x, m):
    return ((x + m - 1) // m) * m


def _pick_tm(M, tm_max=512):
    """Row tile: multiple of 16 (bf16 sublane packing).  Prefer an exact
    divisor of round_up(M,16) (so the padded M equals the logical M and the
    output slice is metadata-only) that yields >= 2 grid steps (v7x has 2
    TensorCores sharding the parallel axis)."""
    M16 = _round_up(M, 16)
    divs = [t for t in range(16, min(tm_max, M16) + 1, 16) if M16 % t == 0]
    good = [t for t in divs if M16 // t >= 2] or divs or [16]
    tm = max(good)
    if tm < 128 and M16 > 512:
        # Only tiny exact divisors exist: take a big tile, accept a little M pad.
        tm = tm_max if M16 >= 2 * tm_max else _round_up(M16 // 2, 16)
    return tm


def _pick_tk(Kp, tk_max=1024):
    """K tile (fallback path): largest divisor of Kp that is a multiple of 128
    and <= tk_max, so no K padding beyond 128-alignment is ever introduced."""
    cands = [t for t in range(128, min(tk_max, Kp) + 1, 128) if Kp % t == 0]
    return max(cands) if cands else Kp


# ----------------------------- kernels ---------------------------------------

def _resident_weight_kernel(x_ref, w_ref, b_ref, o_ref):
    # x_ref: (tm, Kp) bf16   w_ref: (Kp, Ep) bf16 (resident, DMA'd once)
    # b_ref: (1, Ep)  f32    o_ref: (tm, Ep)
    o_ref[...] = (jnp.dot(x_ref[...], w_ref[...],
                          preferred_element_type=jnp.float32)
                  + b_ref[...]).astype(o_ref.dtype)


def _kacc_kernel_f32(x_ref, w_ref, b_ref, o_ref):
    # K-accumulating fallback, f32 output: accumulate directly into o_ref
    # (output block is resident across the k axis), no scratch needed.
    k = pl.program_id(1)

    @pl.when(k == 0)
    def _init():
        o_ref[...] = jnp.broadcast_to(b_ref[...], o_ref.shape)

    o_ref[...] += jnp.dot(x_ref[...], w_ref[...],
                          preferred_element_type=jnp.float32)


def _kacc_kernel_cast(x_ref, w_ref, b_ref, o_ref, acc_ref):
    # K-accumulating fallback for non-f32 outputs: f32 VMEM accumulator.
    k = pl.program_id(1)

    @pl.when(k == 0)
    def _init():
        acc_ref[...] = jnp.zeros_like(acc_ref)

    acc_ref[...] += jnp.dot(x_ref[...], w_ref[...],
                            preferred_element_type=jnp.float32)

    @pl.when(k == pl.num_programs(1) - 1)
    def _finalize():
        o_ref[...] = (acc_ref[...] + b_ref[...]).astype(o_ref.dtype)


# ----------------------------- wrapper ----------------------------------------

def patch_embedding_pallas(x, weight, bias, patch_size,
                           *, compute_dtype=jnp.bfloat16):
    """x: (B, C, T, H, W); weight: (E, C, P, P, P); bias: (E,). Returns (B, N, E).

    NOTE: output dtype follows x.dtype (bf16 activations -> bf16 output), with
    f32 accumulation inside the kernel.
    """
    B, C, T, H, W = x.shape
    E = weight.shape[0]
    P = patch_size
    assert T % P == 0 and H % P == 0 and W % P == 0, \
        "T/H/W must be divisible by patch_size"
    nT, nH, nW = T // P, H // P, W // P
    N = nT * nH * nW
    K = C * P * P * P
    M = B * N
    out_dtype = x.dtype
    cdt_bytes = jnp.dtype(compute_dtype).itemsize
    out_bytes = jnp.dtype(out_dtype).itemsize

    # --- glue: non-overlapping patch extraction -------------------------------
    # Cast to the MXU compute dtype BEFORE the transpose so the materialized
    # patch buffer is half-width (one bf16 pass instead of f32 + bf16 copy).
    # Flatten order (C, pt, ph, pw) matches the Conv3d weight layout; sequence
    # order (t, h, w) row-major matches 'b c t h w -> b (t h w) c'.
    # TODO(synk): fuse patch extraction into the kernel (grid over (b, nT, nH)
    # slabs of raw x with memory_space=pl.ANY) to remove this HBM round trip.
    xp = x.astype(compute_dtype).reshape(B, C, nT, P, nH, P, nW, P)
    patches = xp.transpose(0, 2, 4, 6, 1, 3, 5, 7).reshape(M, K)

    w2d = weight.reshape(E, K).T.astype(compute_dtype)    # (K, E)
    b2d = bias.reshape(1, E).astype(jnp.float32)

    # --- tiling ----------------------------------------------------------------
    Kp = _round_up(K, 128)
    Ep = _round_up(E, 128)          # == E for typical ViViT widths (768, 1024)
    tm = _pick_tm(M)
    Mp = _round_up(M, tm)

    # Zero padding is a no-op when shapes are already aligned; padded K columns
    # contribute nothing, padded M rows / E cols are sliced off at the end.
    patches = jnp.pad(patches, ((0, Mp - M), (0, Kp - K)))
    w2d = jnp.pad(w2d, ((0, Kp - K), (0, Ep - E)))
    b2d = jnp.pad(b2d, ((0, 0), (0, Ep - E)))

    m_steps = Mp // tm
    weight_bytes = Kp * Ep * cdt_bytes
    patch_dbuf = 2 * tm * Kp * cdt_bytes
    out_dbuf = 2 * tm * Ep * out_bytes

    # Weight-resident fast path whenever the full weight + tile buffers fit
    # comfortably in VMEM (typical ViViT: K<=4096, E<=1024 -> weight <= 8 MiB).
    resident = (weight_bytes + patch_dbuf + out_dbuf) <= 40 * 1024 * 1024

    if resident:
        grid = (m_steps,)
        in_specs = [
            pl.BlockSpec((tm, Kp), lambda i: (i, 0)),      # patch row tile
            pl.BlockSpec((Kp, Ep), lambda i: (0, 0)),      # weight, resident (1 DMA)
            pl.BlockSpec((1, Ep), lambda i: (0, 0)),       # bias, resident
        ]
        out_specs = pl.BlockSpec((tm, Ep), lambda i: (i, 0))
        scratch_shapes = []
        kernel = _resident_weight_kernel
        dim_sem = ("parallel",)
        work = weight_bytes + patch_dbuf + out_dbuf + 2 * Ep * 4
        hbm_bytes = (Mp * Kp * cdt_bytes + weight_bytes + Ep * 4
                     + Mp * Ep * out_bytes)
    else:
        tk = _pick_tk(Kp)
        grid = (m_steps, Kp // tk)                          # reduction axis last
        in_specs = [
            pl.BlockSpec((tm, tk), lambda i, k: (i, k)),
            pl.BlockSpec((tk, Ep), lambda i, k: (k, 0)),
            pl.BlockSpec((1, Ep), lambda i, k: (0, 0)),
        ]
        out_specs = pl.BlockSpec((tm, Ep), lambda i, k: (i, 0))
        if out_dtype == jnp.float32:
            kernel = _kacc_kernel_f32
            scratch_shapes = []
        else:
            kernel = _kacc_kernel_cast
            scratch_shapes = [pltpu.VMEM((tm, Ep), jnp.float32)]
        dim_sem = ("parallel", "arbitrary")
        work = (2 * tm * tk * cdt_bytes + 2 * tk * Ep * cdt_bytes + out_dbuf
                + (tm * Ep * 4 if scratch_shapes else 0) + 2 * Ep * 4)
        # Weight is re-streamed once per M tile: account for real traffic.
        hbm_bytes = (Mp * Kp * cdt_bytes + m_steps * weight_bytes + Ep * 4
                     + Mp * Ep * out_bytes)

    # Working set + ~50% headroom for Mosaic internals, capped below v7x's
    # 64 MiB physical VMEM (v5e/v6e have 128 MiB, cap is still safe there).
    vmem_limit = int(min(64 * 1024 * 1024,
                         max(work + work // 2 + 4 * 1024 * 1024,
                             16 * 1024 * 1024)))

    cost = pl.CostEstimate(flops=2 * Mp * Kp * Ep, transcendentals=0,
                           bytes_accessed=int(hbm_bytes))

    out2d = pl.pallas_call(
        kernel,
        out_shape=jax.ShapeDtypeStruct((Mp, Ep), out_dtype),
        grid_spec=pltpu.PrefetchScalarGridSpec(
            num_scalar_prefetch=0,
            grid=grid,
            in_specs=in_specs,
            out_specs=out_specs,
            scratch_shapes=scratch_shapes,
        ),
        compiler_params=pltpu.CompilerParams(
            dimension_semantics=dim_sem,
            vmem_limit_bytes=vmem_limit,
            allow_input_fusion=[True, True, True],
        ),
        cost_estimate=cost,
    )(patches, w2d, b2d)

    if Mp != M or Ep != E:
        out2d = out2d[:M, :E]
    return out2d.reshape(B, N, E)


def _reference(x, weight, bias, patch_size):
    """Pure-JAX reference via conv_general_dilated (matches PyTorch Conv3d)."""
    P = patch_size
    y = jax.lax.conv_general_dilated(
        x, weight,
        window_strides=(P, P, P),
        padding="VALID",
        dimension_numbers=("NCDHW", "OIDHW", "NCDHW"),
        precision=jax.lax.Precision.HIGHEST,
    )
    y = y + bias.reshape(1, -1, 1, 1, 1)
    B, E, t, h, w = y.shape
    return y.transpose(0, 2, 3, 4, 1).reshape(B, t * h * w, E)


if __name__ == "__main__":
    key = jax.random.PRNGKey(0)
    k_x, k_w, k_b = jax.random.split(key, 3)

    B, C, T, H, W = 2, 4, 4, 8, 8
    patch_size = 2
    embed_dim = 32

    x = jax.random.normal(k_x, (B, C, T, H, W), dtype=jnp.float32)
    # deterministic synthetic Conv3d params (shapes per nn.Conv3d(C, E, P, stride=P))
    fan_in = C * patch_size ** 3
    bound = 1.0 / jnp.sqrt(fan_in)
    weight = jax.random.uniform(
        k_w, (embed_dim, C, patch_size, patch_size, patch_size),
        minval=-bound, maxval=bound, dtype=jnp.float32)
    bias = jax.random.uniform(
        k_b, (embed_dim,), minval=-bound, maxval=bound, dtype=jnp.float32)

    out = patch_embedding_pallas(x, weight, bias, patch_size)
    out = jax.block_until_ready(out)

    N = (T // patch_size) * (H // patch_size) * (W // patch_size)
    assert out.shape == (B, N, embed_dim)

    # Full-precision reference (loose tolerance: kernel uses bf16 MXU inputs).
    ref = _reference(x, weight, bias, patch_size)
    assert ref.shape == out.shape
    assert jnp.allclose(out, ref, atol=5e-2, rtol=5e-2), "mismatch vs f32 reference"

    # bf16-quantized-input reference (tight tolerance, same effective precision).
    ref_q = _reference(x.astype(jnp.bfloat16).astype(jnp.float32),
                       weight.astype(jnp.bfloat16).astype(jnp.float32),
                       bias, patch_size)
    assert jnp.allclose(out, ref_q, atol=1e-3, rtol=1e-3), "mismatch vs bf16 reference"

    print("KERNEL_OK")
</pallas_src>

<mosaic_0001>
module attributes {stable_mosaic.version = 11 : i64} {
  func.func @_resident_weight_kernel(%arg0: i32, %arg1: memref<32x128xbf16, #tpu.memory_space<vmem>>, %arg2: memref<128x128xbf16, #tpu.memory_space<vmem>>, %arg3: memref<1x128xf32, #tpu.memory_space<vmem>>, %arg4: memref<32x128xf32, #tpu.memory_space<vmem>>) attributes {dimension_semantics = [#tpu.dimension_semantics<parallel>], iteration_bounds = array<i64: 2>, scalar_prefetch = 0 : i64, scratch_operands = 0 : i64, tpu.core_type = #tpu.core_type<tc>, window_params = [{transform_indices = @transform_0, window_bounds = array<i64: 32, 128>}, {pipeline_mode = #tpu.pipeline_mode<synchronous>, transform_indices = @transform_1, window_bounds = array<i64: 128, 128>}, {pipeline_mode = #tpu.pipeline_mode<synchronous>, transform_indices = @transform_2, window_bounds = array<i64: 1, 128>}, {transform_indices = @transform_3, window_bounds = array<i64: 32, 128>}]} {
    %c0 = arith.constant 0 : index
    %c0_0 = arith.constant 0 : index
    %0 = vector.load %arg1[%c0, %c0_0] : memref<32x128xbf16, #tpu.memory_space<vmem>>, vector<32x128xbf16>
    %c0_1 = arith.constant 0 : index
    %c0_2 = arith.constant 0 : index
    %1 = vector.load %arg2[%c0_1, %c0_2] : memref<128x128xbf16, #tpu.memory_space<vmem>>, vector<128x128xbf16>
    %cst = arith.constant dense<0.000000e+00> : vector<32x128xf32>
    %2 = tpu.matmul %0, %1, %cst {dimension_numbers = #tpu.dot_dimension_numbers<[1], [0], [0], [1], [0, 0, 1, 1], [], []>} : vector<32x128xbf16>, vector<128x128xbf16>, vector<32x128xf32> -> vector<32x128xf32>
    %c0_3 = arith.constant 0 : index
    %c0_4 = arith.constant 0 : index
    %3 = vector.load %arg3[%c0_3, %c0_4] : memref<1x128xf32, #tpu.memory_space<vmem>>, vector<1x128xf32>
    %4 = vector.broadcast %3 : vector<1x128xf32> to vector<32x128xf32>
    %5 = arith.addf %2, %4 : vector<32x128xf32>
    %c0_5 = arith.constant 0 : index
    %c0_6 = arith.constant 0 : index
    %6 = vector.load %arg4[%c0_5, %c0_6] : memref<32x128xf32, #tpu.memory_space<vmem>>, vector<32x128xf32>
    tpu.vector_store %arg4[%c0_5, %c0_6], %5 {strides = array<i32>} : memref<32x128xf32, #tpu.memory_space<vmem>>, vector<32x128xf32>,
    return
  }
  func.func @transform_0(%arg0: i32) -> (i32, i32) {
    %c0_i32 = arith.constant 0 : i32
    %c0_i32_0 = arith.constant 0 : i32
    return %arg0, %c0_i32 : i32, i32
  }
  func.func @transform_1(%arg0: i32) -> (i32, i32) {
    %c0_i32 = arith.constant 0 : i32
    %c0_i32_0 = arith.constant 0 : i32
    %c0_i32_1 = arith.constant 0 : i32
    return %c0_i32, %c0_i32_0 : i32, i32
  }
  func.func @transform_2(%arg0: i32) -> (i32, i32) {
    %c0_i32 = arith.constant 0 : i32
    %c0_i32_0 = arith.constant 0 : i32
    %c0_i32_1 = arith.constant 0 : i32
    return %c0_i32, %c0_i32_0 : i32, i32
  }
  func.func @transform_3(%arg0: i32) -> (i32, i32) {
    %c0_i32 = arith.constant 0 : i32
    %c0_i32_0 = arith.constant 0 : i32
    return %arg0, %c0_i32 : i32, i32
  }
}

</mosaic_0001>

<llo_original>
// kernel: tpu_custom_call.1
$region0: #{tpu_custom_call.1}
  #allocation0 [shape = 'u32[]', space=smem, size = 0x4, offset = 0x4, fixed_abs, tag = 'smem constant byte address 0x4 - core index']
  #allocation1 [shape = 'u32[72,128]{1,0:T(1,128)}', space=vmem, size = 0x9000, scoped, tag = 'internal scratch']
  %s0 = inlined_call_operand.hbm [shape: bf16[64,128], index: 0, kind: input, shape index: {}]
  %s1 = inlined_call_operand.hbm [shape: bf16[128,128], index: 1, kind: input, shape index: {}]
  %s2 = inlined_call_operand.vmem [shape: f32[1,128], index: 2, kind: input, shape index: {}]
  %s3 = inlined_call_operand.hbm [shape: f32[64,128], index: 3, kind: output, shape index: {}]
  %s4 = sld [smem:[#allocation0]]
  $region53: #{tpu_custom_call.1} parent=0
    _
  %s6 = ssub.s32 1, %s4
  %s7 = scalar_select 0, %s6, %s4
  $region1: #{tpu_custom_call.1} parent=0
    #allocation2 [shape = 'u8[16384]{0}', space=vmem, size = 0x4000, scoped, tag = 'input window, operand 0']
    #allocation3 [shape = 's32[2]{0}', space=sflag, size = 0x8, scoped, tag = 'scoped memory for tpu_custom_call.1']
    #allocation4 [shape = 's32[2]{0}', space=sflag, size = 0x8, scoped, tag = 'scoped memory for tpu_custom_call.1']
    #allocation5 [shape = 'u8[32768]{0}', space=vmem, size = 0x8000, scoped, tag = 'input window, operand 1, single buffered']
    #allocation6 [shape = 's32[1]{0}', space=sflag, size = 0x4, scoped, tag = 'scoped memory for tpu_custom_call.1']
    #allocation7 [shape = 'u8[32768]{0}', space=vmem, size = 0x8000, scoped, tag = 'output window, operand 0']
    %8 = vsyncpa [#allocation3], 0
    %s9 = scalar_lea.sflag [#allocation3], 1
    %10 = vsyncpa %s9, 0
    %11 = vsyncpa [#allocation6], 0
    %12 = vsyncpa [#allocation4], 0
    %s13 = scalar_lea.sflag [#allocation4], 1
    %14 = vsyncpa %s13, 0
    loop: start=0, step=1, limit=4
    $region2: #{tpu_custom_call.1} parent=1 // loop_pre_header
      _
    $region3: #{tpu_custom_call.1} parent=1 // loop_header
      %s16 = sphi 0, %s20
      %p17 = scmp.ge.s32.totalorder %s16, 4
      %s26 = sphi 0, %s28
      %s29 = sphi 0, %s26
      %s30 = sphi 0, %s29
      %s46 = sphi 0, %s30
      %s50 = sphi 0, %s50
      %s52 = sphi 0, %s50
      %s53 = sphi 0, %s52
      %s67 = sphi 0, %s53
      %s71 = sphi 0, %s71
      %s73 = sphi 0, %s71
      %s74 = sphi 0, %s73
      %s88 = sphi 0, %s74
      %s94 = sphi 0, %s96
      %s97 = sphi 0, %s94
      %s98 = sphi 0, %s97
      %s114 = sphi 0, %s98
    $region4: #{tpu_custom_call.1} parent=1 // loop_header_branch
      %19 = sbr.rel (%p17) target = $region8
    $region5: #{tpu_custom_call.1} parent=1 // loop_body
      %s21 = ssub.s32 %s16, 1
      %s22 = ssub.s32 %s16, 2
      %s23 = sadd.s32 %s16, 1
      %s24 = ssub.s32 %s16, %s23
      %p25 = scmp.eq.s32.totalorder %s24, 0
      %s27 = sadd.s32 %s26, 1
      %s28 = scalar_select %p25, %s26, %s27
      %p31 = pneg %p25
      %p32 = scmp.eq.s32.totalorder %s16, 1
      %p33 = por %p31, %p32
      %p34 = scmp.ne.s32.totalorder %s26, %s29
      %p35 = scmp.eq.s32.totalorder %s16, 0
      %p36 = por %p34, %p35
      %p37 = scmp.ne.s32.totalorder %s26, %s29
      %p38 = scmp.eq.s32.totalorder %s21, 1
      %p39 = por %p37, %p38
      %p40 = scmp.ne.s32.totalorder %s29, %s30
      %p41 = scmp.eq.s32.totalorder %s21, 0
      %p42 = por %p40, %p41
      %p43 = scmp.ne.s32.totalorder %s29, %s30
      %p44 = scmp.eq.s32.totalorder %s22, 1
      %p45 = por %p43, %p44
      %p47 = scmp.ne.s32.totalorder %s30, %s46
      %p48 = scmp.eq.s32.totalorder %s22, 0
      %p49 = por %p47, %p48
      %s51 = sadd.s32 %s50, 1
      %p54 = scmp.eq.s32.totalorder %s16, 1
      %p55 = scmp.ne.s32.totalorder %s50, %s52
      %p56 = scmp.eq.s32.totalorder %s16, 0
      %p57 = por %p55, %p56
      %p58 = scmp.ne.s32.totalorder %s50, %s52
      %p59 = scmp.eq.s32.totalorder %s21, 1
      %p60 = por %p58, %p59
      %p61 = scmp.ne.s32.totalorder %s52, %s53
      %p62 = scmp.eq.s32.totalorder %s21, 0
      %p63 = por %p61, %p62
      %p64 = scmp.ne.s32.totalorder %s52, %s53
      %p65 = scmp.eq.s32.totalorder %s22, 1
      %p66 = por %p64, %p65
      %p68 = scmp.ne.s32.totalorder %s53, %s67
      %p69 = scmp.eq.s32.totalorder %s22, 0
      %p70 = por %p68, %p69
      %s72 = sadd.s32 %s71, 1
      %p75 = scmp.eq.s32.totalorder %s16, 1
      %p76 = scmp.ne.s32.totalorder %s71, %s73
      %p77 = scmp.eq.s32.totalorder %s16, 0
      %p78 = por %p76, %p77
      %p79 = scmp.ne.s32.totalorder %s71, %s73
      %p80 = scmp.eq.s32.totalorder %s21, 1
      %p81 = por %p79, %p80
      %p82 = scmp.ne.s32.totalorder %s73, %s74
      %p83 = scmp.eq.s32.totalorder %s21, 0
      %p84 = por %p82, %p83
      %p85 = scmp.ne.s32.totalorder %s73, %s74
      %p86 = scmp.eq.s32.totalorder %s22, 1
      %p87 = por %p85, %p86
      %p89 = scmp.ne.s32.totalorder %s74, %s88
      %p90 = scmp.eq.s32.totalorder %s22, 0
      %p91 = por %p89, %p90
      %s92 = ssub.s32 %s16, %s23
      %p93 = scmp.eq.s32.totalorder %s92, 0
      %s95 = sadd.s32 %s94, 1
      %s96 = scalar_select %p93, %s94, %s95
      %p99 = pneg %p93
      %p100 = scmp.eq.s32.totalorder %s16, 1
      %p101 = por %p99, %p100
      %p102 = scmp.ne.s32.totalorder %s94, %s97
      %p103 = scmp.eq.s32.totalorder %s16, 0
      %p104 = por %p102, %p103
      %p105 = scmp.ne.s32.totalorder %s94, %s97
      %p106 = scmp.eq.s32.totalorder %s21, 1
      %p107 = por %p105, %p106
      %p108 = scmp.ne.s32.totalorder %s97, %s98
      %p109 = scmp.eq.s32.totalorder %s21, 0
      %p110 = por %p108, %p109
      %p111 = scmp.ne.s32.totalorder %s97, %s98
      %p112 = scmp.eq.s32.totalorder %s22, 1
      %p113 = por %p111, %p112
      %p115 = scmp.ne.s32.totalorder %s98, %s114
      %p116 = scmp.eq.s32.totalorder %s22, 0
      %p117 = por %p115, %p116
      %p118 = scmp.le.s32.totalorder 1, %s16
      %p119 = scmp.lt.s32.totalorder %s16, 3
      %p120 = pnand %p118, %p119
      %p121 = pneg %p120
      // Predicated region
      $region9: #{tpu_custom_call.1} parent=5 // pred_check
        _
      $region10: #{tpu_custom_call.1} parent=5 // pred_check_branch
        %123 = sbr.rel (%p120) target = $region12
      $region11: #{tpu_custom_call.1} parent=5 // pred_region
        %s124 = ssub.s32 %s16, 1
        // Predicated region
        $region13: #{tpu_custom_call.1} parent=11 // pred_check
          %p125 = pneg %p63
        $region14: #{tpu_custom_call.1} parent=11 // pred_check_branch
          %127 = sbr.rel (%p125) target = $region16
        $region15: #{tpu_custom_call.1} parent=11 // pred_region
          %129 = vsyncadd [#allocation6], 0
          %s130 = sshll.u32 %s1, 4
          %s131 = int_to_ptr.hbm [resolvable:$true] %s130
          %s132 = sshll.u32 [#allocation5], 4
          %s133 = int_to_ptr.vmem [resolvable:$true] %s132
          %138 = dma.hbm_to_vmem [thread:$0]  %s131, 1024, %s133, [#allocation6], 64, 64, 4
        $region16: #{tpu_custom_call.1} parent=11 // pred_fallthru
          _
        // Predicated region
        $region17: #{tpu_custom_call.1} parent=11 // pred_check
          %p139 = pneg %p84
        $region18: #{tpu_custom_call.1} parent=11 // pred_check_branch
          %141 = sbr.rel (%p139) target = $region20
        $region19: #{tpu_custom_call.1} parent=11 // pred_region
          _
        $region20: #{tpu_custom_call.1} parent=11 // pred_fallthru
          _
      $region12: #{tpu_custom_call.1} parent=5 // pred_fallthru
        _
      %p142 = scmp.lt.s32.totalorder %s16, 2
      // Predicated region
      $region21: #{tpu_custom_call.1} parent=5 // pred_check
        %p143 = pneg %p142
      $region22: #{tpu_custom_call.1} parent=5 // pred_check_branch
        %145 = sbr.rel (%p143) target = $region24
      $region23: #{tpu_custom_call.1} parent=5 // pred_region
        // Predicated region
        $region25: #{tpu_custom_call.1} parent=23 // pred_check
          %p146 = pneg %p36
        $region26: #{tpu_custom_call.1} parent=23 // pred_check_branch
          %148 = sbr.rel (%p146) target = $region28
        $region27: #{tpu_custom_call.1} parent=23 // pred_region
          %s149 = sand.u32 %s26, 1
          %s150 = scalar_lea.sflag [#allocation3], %s149
          %s151 = sand.u32 %s26, 1
          %s152 = smul.addr %s151, 16
          %s153 = scalar_lea.vmem [#allocation2], %s152
          %s154 = smul.u32 4, %s16
          %156 = vsyncadd %s150, 0
          %s157 = smul.addr %s154, 4
          %s158 = scalar_lea.hbm %s0, %s157
          %s159 = sshll.u32 %s158, 4
          %s160 = int_to_ptr.hbm [resolvable:$true] %s159
          %s161 = sshll.u32 %s153, 4
          %s162 = int_to_ptr.vmem [resolvable:$true] %s161
          %167 = dma.hbm_to_vmem [thread:$0]  %s160, 256, %s162, %s150, 64, 64, 4
        $region28: #{tpu_custom_call.1} parent=23 // pred_fallthru
          _
      $region24: #{tpu_custom_call.1} parent=5 // pred_fallthru
        _
      %p168 = scmp.le.s32.totalorder 1, %s16
      %p169 = scmp.lt.s32.totalorder %s16, 3
      %p170 = pnand %p168, %p169
      %p171 = pneg %p170
      // Predicated region
      $region29: #{tpu_custom_call.1} parent=5 // pred_check
        _
      $region30: #{tpu_custom_call.1} parent=5 // pred_check_branch
        %173 = sbr.rel (%p170) target = $region32
      $region31: #{tpu_custom_call.1} parent=5 // pred_region
        %s174 = ssub.s32 %s16, 1
        %s175 = sand.u32 %s29, 1
        %s176 = scalar_lea.sflag [#allocation3], %s175
        %s177 = sand.u32 %s29, 1
        %s178 = smul.addr %s177, 16
        %s179 = scalar_lea.vmem [#allocation2], %s178
        // Predicated region
        $region33: #{tpu_custom_call.1} parent=31 // pred_check
          %p180 = pneg %p42
        $region34: #{tpu_custom_call.1} parent=31 // pred_check_branch
          %182 = sbr.rel (%p180) target = $region36
        $region35: #{tpu_custom_call.1} parent=31 // pred_region
          %184 = dma.done %s176, 256
        $region36: #{tpu_custom_call.1} parent=31 // pred_fallthru
          _
        // Predicated region
        $region37: #{tpu_custom_call.1} parent=31 // pred_check
          %p185 = pneg %p63
        $region38: #{tpu_custom_call.1} parent=31 // pred_check_branch
          %187 = sbr.rel (%p185) target = $region40
        $region39: #{tpu_custom_call.1} parent=31 // pred_region
          %189 = dma.done [#allocation6], 1024
        $region40: #{tpu_custom_call.1} parent=31 // pred_fallthru
          _
        %s190 = sand.u32 %s29, 1
        %s191 = scalar_lea.sflag [#allocation3], %s190
        %s192 = sand.u32 %s29, 1
        %s193 = smul.addr %s192, 16
        %s194 = scalar_lea.vmem [#allocation2], %s193
        %p195 = pneg %p42
        %p196 = pneg %p39
        %p197 = pneg %p63
        %p198 = pneg %p60
        %p199 = pneg %p84
        %p200 = pneg %p81
        %p201 = pneg %p110
        %p202 = pneg %p107
        %s203 = sand.u32 %s97, 1
        %s204 = scalar_lea.sflag [#allocation4], %s203
        %s205 = sand.u32 %s97, 1
        %s206 = smul.addr %s205, 32
        %s207 = scalar_lea.vmem [#allocation7], %s206
        %s208 = smul.u32 4, %s21
        %s209 = smul.u32 4, %s21
        %v210 = vld [vmem:[%s179] sm:$0xf]
        %v211 = vld [vmem:[%s179 + $0x4] sm:$0xf]
        %v212 = vld [vmem:[%s179 + $0x8] sm:$0xf]
        %v213 = vld [vmem:[%s179 + $0xc] sm:$0xf]
        %v214 = vld [vmem:[#allocation5] sm:$0xf]
        %v215 = vld [vmem:[#allocation5 + $0x4] sm:$0xf]
        %v216 = vld [vmem:[#allocation5 + $0x8] sm:$0xf]
        %v217 = vld [vmem:[#allocation5 + $0xc] sm:$0xf]
        %v218 = vld [vmem:[#allocation5 + $0x10] sm:$0xf]
        %v219 = vld [vmem:[#allocation5 + $0x14] sm:$0xf]
        %v220 = vld [vmem:[#allocation5 + $0x18] sm:$0xf]
        %v221 = vld [vmem:[#allocation5 + $0x1c] sm:$0xf]
        %v222 = vld [vmem:[#allocation5 + $0x20] sm:$0xf]
        %v223 = vld [vmem:[#allocation5 + $0x24] sm:$0xf]
        %v224 = vld [vmem:[#allocation5 + $0x28] sm:$0xf]
        %v225 = vld [vmem:[#allocation5 + $0x2c] sm:$0xf]
        %v226 = vld [vmem:[#allocation5 + $0x30] sm:$0xf]
        %v227 = vld [vmem:[#allocation5 + $0x34] sm:$0xf]
        %v228 = vld [vmem:[#allocation5 + $0x38] sm:$0xf]
        %v229 = vld [vmem:[#allocation5 + $0x3c] sm:$0xf]
        %v230 = vld [vmem:[%s2] sm:$0x1]
        %v232 = vperm.slane %v230, 0
        %v238 = vunpack.c.l.b16 %v210
        %v239 = vunpack.c.l.b16 %v211
        %v240 = vunpack.c.l.b16 %v212
        %v241 = vunpack.c.l.b16 %v213
        %v242 = vpack.c.b16 %v239, %v238
        %v243 = vpack.c.b16 %v241, %v240
        %v262 = vunpack.c.l.b16 %v214
        %v263 = vunpack.c.l.b16 %v215
        %v264 = vunpack.c.l.b16 %v216
        %v265 = vunpack.c.l.b16 %v217
        %v266 = vunpack.c.l.b16 %v218
        %v267 = vunpack.c.l.b16 %v219
        %v268 = vunpack.c.l.b16 %v220
        %v269 = vunpack.c.l.b16 %v221
        %v270 = vunpack.c.l.b16 %v222
        %v271 = vunpack.c.l.b16 %v223
        %v272 = vunpack.c.l.b16 %v224
        %v273 = vunpack.c.l.b16 %v225
        %v274 = vunpack.c.l.b16 %v226
        %v275 = vunpack.c.l.b16 %v227
        %v276 = vunpack.c.l.b16 %v228
        %v277 = vunpack.c.l.b16 %v229
        %v278 = vpack.c.b16 %v263, %v262
        %v279 = vpack.c.b16 %v265, %v264
        %v280 = vpack.c.b16 %v267, %v266
        %v281 = vpack.c.b16 %v269, %v268
        %v282 = vpack.c.b16 %v271, %v270
        %v283 = vpack.c.b16 %v273, %v272
        %v284 = vpack.c.b16 %v275, %v274
        %v285 = vpack.c.b16 %v277, %v276
        %294 = vmatpush.bf16.msra.mxu0 %v285
        %295 = vmatpush.bf16.msra.mxu0 %v284
        %296 = vmatpush.bf16.msra.mxu0 %v283
        %297 = vmatpush.bf16.msra.mxu0 %v282
        %298 = vmatpush.bf16.msra.mxu0 %v281
        %299 = vmatpush.bf16.msra.mxu0 %v280
        %300 = vmatpush.bf16.msra.mxu0 %v279
        %301 = vmatpush.bf16.msra.mxu0 %v278
        %302 = vmatmul.bf16.gmra.mxu0 %v242
        %v303 = vpop.f32.mrf.mxu0
        %v304 = vadd.f32 %v232, %v303
        %v305 = vpop.f32.mrf.mxu0
        %v306 = vadd.f32 %v232, %v305
        %307 = vmatmul.bf16.gmra.mxu0 %v243
        %v308 = vpop.f32.mrf.mxu0
        %v309 = vadd.f32 %v232, %v308
        %v310 = vpop.f32.mrf.mxu0
        %v311 = vadd.f32 %v232, %v310
        %312 = vdwg.mxu0
        %313 = vst [vmem:[%s207] sm:$0xff] %v304
        %314 = vst [vmem:[%s207 + $0x8] sm:$0xff] %v306
        %315 = vst [vmem:[%s207 + $0x10] sm:$0xff] %v309
        %316 = vst [vmem:[%s207 + $0x18] sm:$0xff] %v311
        %s317 = sand.u32 %s97, 1
        %s318 = scalar_lea.sflag [#allocation4], %s317
        %s319 = sand.u32 %s97, 1
        %s320 = smul.addr %s319, 32
        %s321 = scalar_lea.vmem [#allocation7], %s320
        // Predicated region
        $region41: #{tpu_custom_call.1} parent=31 // pred_check
          %p322 = pneg %p107
        $region42: #{tpu_custom_call.1} parent=31 // pred_check_branch
          %324 = sbr.rel (%p322) target = $region44
        $region43: #{tpu_custom_call.1} parent=31 // pred_region
          %s325 = smul.u32 4, %s21
          %327 = vsyncadd %s318, 0
          %s328 = smul.addr %s325, 8
          %s329 = scalar_lea.hbm %s3, %s328
          %s330 = sshll.u32 %s321, 4
          %s331 = int_to_ptr.vmem [resolvable:$true] %s330
          %s332 = sshll.u32 %s329, 4
          %s333 = int_to_ptr.hbm [resolvable:$true] %s332
          %338 = dma.vmem_to_hbm [thread:$0]  %s331, 512, %s333, %s318, 128, 128, 8
        $region44: #{tpu_custom_call.1} parent=31 // pred_fallthru
          _
      $region32: #{tpu_custom_call.1} parent=5 // pred_fallthru
        _
      %p339 = scmp.le.s32.totalorder 2, %s16
      // Predicated region
      $region45: #{tpu_custom_call.1} parent=5 // pred_check
        %p340 = pneg %p339
      $region46: #{tpu_custom_call.1} parent=5 // pred_check_branch
        %342 = sbr.rel (%p340) target = $region48
      $region47: #{tpu_custom_call.1} parent=5 // pred_region
        %s343 = ssub.s32 %s16, 2
        // Predicated region
        $region49: #{tpu_custom_call.1} parent=47 // pred_check
          %p344 = pneg %p113
        $region50: #{tpu_custom_call.1} parent=47 // pred_check_branch
          %346 = sbr.rel (%p344) target = $region52
        $region51: #{tpu_custom_call.1} parent=47 // pred_region
          %s347 = sand.u32 %s98, 1
          %s348 = scalar_lea.sflag [#allocation4], %s347
          %s349 = sand.u32 %s98, 1
          %s350 = smul.addr %s349, 32
          %s351 = scalar_lea.vmem [#allocation7], %s350
          %353 = dma.done %s348, 512
        $region52: #{tpu_custom_call.1} parent=47 // pred_fallthru
          _
      $region48: #{tpu_custom_call.1} parent=5 // pred_fallthru
        _
    $region6: #{tpu_custom_call.1} parent=1 // loop_footer
      %s20 = sadd.s32 1, %s16
    $region7: #{tpu_custom_call.1} parent=1 // loop_footer_branch
      %15 = sbr.rel target = $region3
    $region8: #{tpu_custom_call.1} parent=1 // loop_exit
      _
    %354 = vsyncpa [#allocation3], 1
    %s355 = scalar_lea.sflag [#allocation3], 1
    %356 = vsyncpa %s355, 1
    %357 = vsyncpa [#allocation6], 1
    %358 = vsyncpa [#allocation4], 1
    %s359 = scalar_lea.sflag [#allocation4], 1
    %360 = vsyncpa %s359, 1

</llo_original>
